<compile_context>
chip_gen: v7x
topology: tpu7x:2x2x1
jax: 0.10.0
libtpu: 0.0.40
codegen_flags: <defaults>
</compile_context>

<pallas_src>
import jax
import jax.numpy as jnp
from jax.experimental import pallas as pl
from jax.experimental.pallas import tpu as pltpu


def _deepstream_kernel(x_ref, out_ref):
    # x_ref:   (TN, C)  anchors x channels, straight from HBM (C = 5 + nc)
    # out_ref: (TN, 6)  rows of [x1, y1, x2, y2, score, label]
    tn, C = x_ref.shape
    nc = C - 5

    # Relayout once to lane-dense (C, TN): anchors on the 128-lane axis.
    # This runs on the XLU slot and hides under the pipeline's DMA; all the
    # compute below then operates at full vreg density.
    xt = jnp.transpose(x_ref[...], (1, 0))                  # (C, TN)

    cx = xt[0:1, :]
    cy = xt[1:2, :]
    hw = 0.5 * xt[2:3, :]
    hh = 0.5 * xt[3:4, :]
    obj = xt[4:5, :]
    cls = xt[5:, :]                                          # (nc, TN)

    # Dense class max + first-occurrence argmax (matches torch.max on ties).
    best = jnp.max(cls, axis=0, keepdims=True)               # (1, TN)
    cid = jax.lax.broadcasted_iota(jnp.int32, cls.shape, 0)  # class ids on sublanes
    label = jnp.min(jnp.where(cls == best, cid, nc),
                    axis=0, keepdims=True)                   # (1, TN) int32
    # NOTE: NaN class scores propagate NaN into `best` (same as the reference
    # max); the emitted label then differs from argmax-of-NaN — irrelevant for
    # real inference inputs.

    # Assemble all six result rows on an (8, TN) canvas (rows 5..7 are filler)
    # and issue a single dense store after one small aligned transpose.
    row = jax.lax.broadcasted_iota(jnp.int32, (8, tn), 0)
    rows = jnp.where(row == 0, cx - hw,
           jnp.where(row == 1, cy - hh,
           jnp.where(row == 2, cx + hw,
           jnp.where(row == 3, cy + hh,
           jnp.where(row == 4, best * obj,
                     label.astype(x_ref.dtype))))))          # (8, TN)
    out_ref[...] = jnp.transpose(rows, (1, 0))[:, :6]        # one (TN, 6) store


def _round_up(v: int, m: int) -> int:
    return (v + m - 1) // m * m


def _pick_tile(n: int, batch: int, max_tn: int) -> int:
    """Anchor tile: multiple of 128, <= max_tn, >=2 total grid steps if possible."""
    max_tn = max(128, (max_tn // 128) * 128)
    tn = min(max_tn, _round_up(n, 128))
    # Split the anchor axis when a single block would leave a v7x TensorCore idle.
    if batch * pl.cdiv(n, tn) < 2 and n > 128:
        tn = _round_up(pl.cdiv(n, 2), 128)
    # Prefer an exact divisor (no ragged tail) when the anchor count allows it.
    if n % 128 == 0:
        while n % tn:
            tn -= 128
    return tn


def deepstream_output(x: jax.Array, *, max_tn: int = 4096) -> jax.Array:
    """x: (B, N, 5 + num_classes) float -> (B, N, 6): [x1,y1,x2,y2,score,label]."""
    B, N, C = x.shape
    assert C > 5, "need at least one class channel"
    tn = _pick_tile(N, B, max_tn)
    grid_n = pl.cdiv(N, tn)   # ragged last block (N % tn != 0) is masked by Pallas

    return pl.pallas_call(
        _deepstream_kernel,
        out_shape=jax.ShapeDtypeStruct((B, N, 6), x.dtype),
        grid_spec=pltpu.PrefetchScalarGridSpec(
            num_scalar_prefetch=0,
            grid=(B, grid_n),
            in_specs=[pl.BlockSpec((None, tn, C), lambda b, n: (b, n, 0))],
            out_specs=pl.BlockSpec((None, tn, 6), lambda b, n: (b, n, 0)),
        ),
        compiler_params=pltpu.CompilerParams(
            dimension_semantics=("parallel", "parallel"),
            vmem_limit_bytes=32 * 1024 * 1024,
        ),
    )(x)


def _reference(x):
    cm = jnp.array(
        [[1.0, 0.0, 1.0, 0.0],
         [0.0, 1.0, 0.0, 1.0],
         [-0.5, 0.0, 0.5, 0.0],
         [0.0, -0.5, 0.0, 0.5]], dtype=x.dtype)
    boxes = jnp.matmul(x[:, :, :4], cm, precision=jax.lax.Precision.HIGHEST)
    objectness = x[:, :, 4:5]
    cls = x[:, :, 5:]
    scores = jnp.max(cls, axis=-1, keepdims=True) * objectness
    labels = jnp.argmax(cls, axis=-1, keepdims=True).astype(x.dtype)
    return jnp.concatenate([boxes, scores, labels], axis=-1)


if __name__ == "__main__":
    key = jax.random.PRNGKey(0)
    B, N, num_classes = 2, 512, 8          # small shapes: x is (2, 512, 13)
    C = 5 + num_classes
    x = jax.random.uniform(key, (B, N, C), dtype=jnp.float32)

    out = jax.block_until_ready(deepstream_output(x))   # grid (2, 1)
    ref = jax.block_until_ready(_reference(x))

    assert out.shape == (B, N, 6)
    assert jnp.allclose(out, ref, atol=1e-5, rtol=1e-5)

    print("KERNEL_OK")
</pallas_src>

<mosaic_0001>
module attributes {stable_mosaic.version = 11 : i64} {
  func.func @_deepstream_kernel(%arg0: i32, %arg1: i32, %arg2: memref<1x512x13xf32, #tpu.memory_space<vmem>>, %arg3: memref<1x512x6xf32, #tpu.memory_space<vmem>>) attributes {dimension_semantics = [#tpu.dimension_semantics<parallel>, #tpu.dimension_semantics<parallel>], iteration_bounds = array<i64: 2, 1>, scalar_prefetch = 0 : i64, scratch_operands = 0 : i64, tpu.core_type = #tpu.core_type<tc>, window_params = [{transform_indices = @transform_0, window_bounds = array<i64: 1, 512, 13>}, {transform_indices = @transform_1, window_bounds = array<i64: 1, 512, 6>}]} {
    %c0 = arith.constant 0 : index
    %c0_0 = arith.constant 0 : index
    %c0_1 = arith.constant 0 : index
    %0 = vector.load %arg2[%c0, %c0_0, %c0_1] : memref<1x512x13xf32, #tpu.memory_space<vmem>>, vector<1x512x13xf32>
    %1 = vector.shape_cast %0 : vector<1x512x13xf32> to vector<512x13xf32>
    %2 = tpu.transpose %1, [1, 0] : vector<512x13xf32> -> vector<13x512xf32>
    %3 = vector.extract_strided_slice %2 {offsets = [0, 0], sizes = [1, 512], strides = [1, 1]} : vector<13x512xf32> to vector<1x512xf32>
    %4 = vector.extract_strided_slice %2 {offsets = [1, 0], sizes = [1, 512], strides = [1, 1]} : vector<13x512xf32> to vector<1x512xf32>
    %5 = vector.extract_strided_slice %2 {offsets = [2, 0], sizes = [1, 512], strides = [1, 1]} : vector<13x512xf32> to vector<1x512xf32>
    %cst = arith.constant 5.000000e-01 : f32
    %6 = vector.broadcast %cst : f32 to vector<1x512xf32>
    %7 = arith.mulf %6, %5 : vector<1x512xf32>
    %8 = vector.extract_strided_slice %2 {offsets = [3, 0], sizes = [1, 512], strides = [1, 1]} : vector<13x512xf32> to vector<1x512xf32>
    %cst_2 = arith.constant 5.000000e-01 : f32
    %9 = vector.broadcast %cst_2 : f32 to vector<1x512xf32>
    %10 = arith.mulf %9, %8 : vector<1x512xf32>
    %11 = vector.extract_strided_slice %2 {offsets = [4, 0], sizes = [1, 512], strides = [1, 1]} : vector<13x512xf32> to vector<1x512xf32>
    %12 = vector.extract_strided_slice %2 {offsets = [5, 0], sizes = [8, 512], strides = [1, 1]} : vector<13x512xf32> to vector<8x512xf32>
    %cst_3 = arith.constant dense<0xFF800000> : vector<512xf32>
    %13 = vector.multi_reduction <maximumf>, %12, %cst_3 [0] : vector<8x512xf32> to vector<512xf32>
    %14 = vector.shape_cast %13 : vector<512xf32> to vector<1x512xf32>
    %15 = tpu.iota {dimensions = array<i32: 0>} : vector<8x512xi32>
    %16 = vector.broadcast %14 : vector<1x512xf32> to vector<8x512xf32>
    %17 = arith.cmpf oeq, %12, %16 : vector<8x512xf32>
    %c8_i32 = arith.constant 8 : i32
    %18 = vector.broadcast %c8_i32 : i32 to vector<8x512xi32>
    %19 = arith.select %17, %15, %18 : vector<8x512xi1>, vector<8x512xi32>
    %cst_4 = arith.constant dense<2147483647> : vector<512xi32>
    %20 = vector.multi_reduction <minsi>, %19, %cst_4 [0] : vector<8x512xi32> to vector<512xi32>
    %21 = vector.shape_cast %20 : vector<512xi32> to vector<1x512xi32>
    %22 = tpu.iota {dimensions = array<i32: 0>} : vector<8x512xi32>
    %c0_i32 = arith.constant 0 : i32
    %23 = vector.broadcast %c0_i32 : i32 to vector<8x512xi32>
    %24 = arith.cmpi eq, %22, %23 : vector<8x512xi32>
    %25 = arith.subf %3, %7 : vector<1x512xf32>
    %c1_i32 = arith.constant 1 : i32
    %26 = vector.broadcast %c1_i32 : i32 to vector<8x512xi32>
    %27 = arith.cmpi eq, %22, %26 : vector<8x512xi32>
    %28 = arith.subf %4, %10 : vector<1x512xf32>
    %c2_i32 = arith.constant 2 : i32
    %29 = vector.broadcast %c2_i32 : i32 to vector<8x512xi32>
    %30 = arith.cmpi eq, %22, %29 : vector<8x512xi32>
    %31 = arith.addf %3, %7 : vector<1x512xf32>
    %c3_i32 = arith.constant 3 : i32
    %32 = vector.broadcast %c3_i32 : i32 to vector<8x512xi32>
    %33 = arith.cmpi eq, %22, %32 : vector<8x512xi32>
    %34 = arith.addf %4, %10 : vector<1x512xf32>
    %c4_i32 = arith.constant 4 : i32
    %35 = vector.broadcast %c4_i32 : i32 to vector<8x512xi32>
    %36 = arith.cmpi eq, %22, %35 : vector<8x512xi32>
    %37 = arith.mulf %14, %11 : vector<1x512xf32>
    %38 = arith.sitofp %21 : vector<1x512xi32> to vector<1x512xf32>
    %39 = vector.shape_cast %37 : vector<1x512xf32> to vector<1x512xf32>
    %40 = vector.broadcast %39 : vector<1x512xf32> to vector<8x512xf32>
    %41 = vector.shape_cast %38 : vector<1x512xf32> to vector<1x512xf32>
    %42 = vector.broadcast %41 : vector<1x512xf32> to vector<8x512xf32>
    %43 = arith.select %36, %40, %42 : vector<8x512xi1>, vector<8x512xf32>
    %44 = vector.shape_cast %34 : vector<1x512xf32> to vector<1x512xf32>
    %45 = vector.broadcast %44 : vector<1x512xf32> to vector<8x512xf32>
    %46 = arith.select %33, %45, %43 : vector<8x512xi1>, vector<8x512xf32>
    %47 = vector.shape_cast %31 : vector<1x512xf32> to vector<1x512xf32>
    %48 = vector.broadcast %47 : vector<1x512xf32> to vector<8x512xf32>
    %49 = arith.select %30, %48, %46 : vector<8x512xi1>, vector<8x512xf32>
    %50 = vector.shape_cast %28 : vector<1x512xf32> to vector<1x512xf32>
    %51 = vector.broadcast %50 : vector<1x512xf32> to vector<8x512xf32>
    %52 = arith.select %27, %51, %49 : vector<8x512xi1>, vector<8x512xf32>
    %53 = vector.shape_cast %25 : vector<1x512xf32> to vector<1x512xf32>
    %54 = vector.broadcast %53 : vector<1x512xf32> to vector<8x512xf32>
    %55 = arith.select %24, %54, %52 : vector<8x512xi1>, vector<8x512xf32>
    %56 = tpu.transpose %55, [1, 0] : vector<8x512xf32> -> vector<512x8xf32>
    %57 = vector.extract_strided_slice %56 {offsets = [0, 0], sizes = [512, 6], strides = [1, 1]} : vector<512x8xf32> to vector<512x6xf32>
    %c0_5 = arith.constant 0 : index
    %c0_6 = arith.constant 0 : index
    %c0_7 = arith.constant 0 : index
    %58 = vector.load %arg3[%c0_5, %c0_6, %c0_7] : memref<1x512x6xf32, #tpu.memory_space<vmem>>, vector<1x512x6xf32>
    %59 = vector.shape_cast %58 : vector<1x512x6xf32> to vector<512x6xf32>
    %60 = vector.shape_cast %57 : vector<512x6xf32> to vector<1x512x6xf32>
    tpu.vector_store %arg3[%c0_5, %c0_6, %c0_7], %60 {strides = array<i32>} : memref<1x512x6xf32, #tpu.memory_space<vmem>>, vector<1x512x6xf32>,
    return
  }
  func.func @transform_0(%arg0: i32, %arg1: i32) -> (i32, i32, i32) {
    %c0_i32 = arith.constant 0 : i32
    %c0_i32_0 = arith.constant 0 : i32
    return %arg0, %arg1, %c0_i32 : i32, i32, i32
  }
  func.func @transform_1(%arg0: i32, %arg1: i32) -> (i32, i32, i32) {
    %c0_i32 = arith.constant 0 : i32
    %c0_i32_0 = arith.constant 0 : i32
    return %arg0, %arg1, %c0_i32 : i32, i32, i32
  }
}

</mosaic_0001>

<llo_original>
// kernel: tpu_custom_call.1
$region0: #{tpu_custom_call.1}
  #allocation0 [shape = 'u32[]', space=smem, size = 0x4, offset = 0x4, fixed_abs, tag = 'smem constant byte address 0x4 - core index']
  #allocation1 [shape = 'u32[144,128]{1,0:T(1,128)}', space=vmem, size = 0x12000, scoped, tag = 'internal scratch']
  %s0 = inlined_call_operand.vmem [shape: f32[2,512,13], index: 0, kind: input, shape index: {}]
  %s1 = inlined_call_operand.vmem [shape: f32[2,512,6], index: 1, kind: output, shape index: {}]
  %s2 = sld [smem:[#allocation0]]
  $region37: #{tpu_custom_call.1} parent=0
    _
  %s4 = ssub.s32 1, %s2
  %s5 = scalar_select 0, %s4, %s2
  loop: start=0, step=1, limit=4
  $region2: #{tpu_custom_call.1} parent=0 // loop_pre_header
    _
  $region3: #{tpu_custom_call.1} parent=0 // loop_header
    %s7 = sphi 0, %s11
    %p8 = scmp.ge.s32.totalorder %s7, 4
    %s14 = sphi 0, %s26
    %s15 = sphi 0, %s22
    %s16 = sphi 0, %s14
    %s17 = sphi 0, %s15
    %s18 = sphi 0, %s16
    %s19 = sphi 0, %s17
    %s31 = sphi 0, %s33
    %s34 = sphi 0, %s31
    %s35 = sphi 0, %s34
    %s51 = sphi 0, %s35
    %s59 = sphi 0, %s61
    %s62 = sphi 0, %s59
    %s63 = sphi 0, %s62
    %s79 = sphi 0, %s63
  $region4: #{tpu_custom_call.1} parent=0 // loop_header_branch
    %10 = sbr.rel (%p8) target = $region8
  $region5: #{tpu_custom_call.1} parent=0 // loop_body
    %s12 = ssub.s32 %s7, 1
    %s13 = ssub.s32 %s7, 2
    %s20 = sadd.s32 1, %s15
    %p21 = scmp.ge.s32.totalorder %s20, 1
    %s22 = scalar_select %p21, 0, %s20
    %s23 = sadd.s32 1, %s14
    %s24 = scalar_select %p21, %s23, %s14
    %p25 = scmp.ge.s32.totalorder %s24, 2
    %s26 = scalar_select %p25, 0, %s24
    %s27 = ssub.s32 %s14, %s26
    %s28 = ssub.s32 %s15, %s22
    %s29 = sor.u32 %s27, %s28
    %p30 = scmp.eq.s32.totalorder %s29, 0
    %s32 = sadd.s32 %s31, 1
    %s33 = scalar_select %p30, %s31, %s32
    %p36 = pneg %p30
    %p37 = scmp.eq.s32.totalorder %s7, 1
    %p38 = por %p36, %p37
    %p39 = scmp.ne.s32.totalorder %s31, %s34
    %p40 = scmp.eq.s32.totalorder %s7, 0
    %p41 = por %p39, %p40
    %p42 = scmp.ne.s32.totalorder %s31, %s34
    %p43 = scmp.eq.s32.totalorder %s12, 1
    %p44 = por %p42, %p43
    %p45 = scmp.ne.s32.totalorder %s34, %s35
    %p46 = scmp.eq.s32.totalorder %s12, 0
    %p47 = por %p45, %p46
    %p48 = scmp.ne.s32.totalorder %s34, %s35
    %p49 = scmp.eq.s32.totalorder %s13, 1
    %p50 = por %p48, %p49
    %p52 = scmp.ne.s32.totalorder %s35, %s51
    %p53 = scmp.eq.s32.totalorder %s13, 0
    %p54 = por %p52, %p53
    %s55 = ssub.s32 %s14, %s26
    %s56 = ssub.s32 %s15, %s22
    %s57 = sor.u32 %s55, %s56
    %p58 = scmp.eq.s32.totalorder %s57, 0
    %s60 = sadd.s32 %s59, 1
    %s61 = scalar_select %p58, %s59, %s60
    %p64 = pneg %p58
    %p65 = scmp.eq.s32.totalorder %s7, 1
    %p66 = por %p64, %p65
    %p67 = scmp.ne.s32.totalorder %s59, %s62
    %p68 = scmp.eq.s32.totalorder %s7, 0
    %p69 = por %p67, %p68
    %p70 = scmp.ne.s32.totalorder %s59, %s62
    %p71 = scmp.eq.s32.totalorder %s12, 1
    %p72 = por %p70, %p71
    %p73 = scmp.ne.s32.totalorder %s62, %s63
    %p74 = scmp.eq.s32.totalorder %s12, 0
    %p75 = por %p73, %p74
    %p76 = scmp.ne.s32.totalorder %s62, %s63
    %p77 = scmp.eq.s32.totalorder %s13, 1
    %p78 = por %p76, %p77
    %p80 = scmp.ne.s32.totalorder %s63, %s79
    %p81 = scmp.eq.s32.totalorder %s13, 0
    %p82 = por %p80, %p81
    %p83 = scmp.le.s32.totalorder 1, %s7
    %p84 = scmp.lt.s32.totalorder %s7, 3
    %p85 = pnand %p83, %p84
    %p86 = pneg %p85
    // Predicated region
    $region9: #{tpu_custom_call.1} parent=5 // pred_check
      _
    $region10: #{tpu_custom_call.1} parent=5 // pred_check_branch
      %88 = sbr.rel (%p85) target = $region12
    $region11: #{tpu_custom_call.1} parent=5 // pred_region
      %s89 = ssub.s32 %s7, 1
    $region12: #{tpu_custom_call.1} parent=5 // pred_fallthru
      _
    %p90 = scmp.lt.s32.totalorder %s7, 2
    // Predicated region
    $region13: #{tpu_custom_call.1} parent=5 // pred_check
      %p91 = pneg %p90
    $region14: #{tpu_custom_call.1} parent=5 // pred_check_branch
      %93 = sbr.rel (%p91) target = $region16
    $region15: #{tpu_custom_call.1} parent=5 // pred_region
      // Predicated region
      $region17: #{tpu_custom_call.1} parent=15 // pred_check
        %p94 = pneg %p41
      $region18: #{tpu_custom_call.1} parent=15 // pred_check_branch
        %96 = sbr.rel (%p94) target = $region20
      $region19: #{tpu_custom_call.1} parent=15 // pred_region
        %s97 = smul.u32 64, %s15
        %p98 = scmp.lt.s32.totalorder %s14, 1
        %s99 = scalar_select %p98, %s14, 1
        %p100 = scmp.lt.s32.totalorder %s97, 63
        %s101 = scalar_select %p100, %s97, 63
        %s102 = smul.addr %s99, 64
        %s103 = sadd.s32 %s101, %s102
        %s104 = smul.addr %s103, 8
        %s105 = scalar_lea.vmem %s0, %s104
        %s106 = smul.u32 64, %s15
      $region20: #{tpu_custom_call.1} parent=15 // pred_fallthru
        _
    $region16: #{tpu_custom_call.1} parent=5 // pred_fallthru
      _
    %p107 = scmp.le.s32.totalorder 1, %s7
    %p108 = scmp.lt.s32.totalorder %s7, 3
    %p109 = pnand %p107, %p108
    %p110 = pneg %p109
    // Predicated region
    $region21: #{tpu_custom_call.1} parent=5 // pred_check
      _
    $region22: #{tpu_custom_call.1} parent=5 // pred_check_branch
      %112 = sbr.rel (%p109) target = $region24
    $region23: #{tpu_custom_call.1} parent=5 // pred_region
      %s113 = ssub.s32 %s7, 1
      %s114 = smul.u32 64, %s17
      %p115 = scmp.lt.s32.totalorder %s16, 1
      %s116 = scalar_select %p115, %s16, 1
      %p117 = scmp.lt.s32.totalorder %s114, 63
      %s118 = scalar_select %p117, %s114, 63
      %s119 = smul.addr %s116, 64
      %s120 = sadd.s32 %s118, %s119
      %s121 = smul.addr %s120, 8
      %s122 = scalar_lea.vmem %s0, %s121
      %p123 = pneg %p47
      %p124 = pneg %p44
      %p125 = pneg %p75
      %p126 = pneg %p72
      %s127 = smul.u32 64, %s17
      %p128 = scmp.lt.s32.totalorder %s16, 1
      %s129 = scalar_select %p128, %s16, 1
      %p130 = scmp.lt.s32.totalorder %s127, 63
      %s131 = scalar_select %p130, %s127, 63
      %s132 = smul.addr %s129, 64
      %s133 = sadd.s32 %s131, %s132
      %s134 = smul.addr %s133, 8
      %s135 = scalar_lea.vmem %s1, %s134
      %s136 = smul.u32 64, %s17
      %p137 = scmp.lt.s32.totalorder %s16, 1
      %s138 = scalar_select %p137, %s16, 1
      %p139 = scmp.lt.s32.totalorder %s136, 63
      %s140 = scalar_select %p139, %s136, 63
      %s141 = smul.addr %s138, 64
      %s142 = sadd.s32 %s140, %s141
      %s143 = smul.addr %s142, 8
      %s144 = scalar_lea.vmem %s0, %s143
      %s145 = smul.u32 64, %s17
      %s146 = smul.u32 64, %s17
      %p147 = scmp.lt.s32.totalorder %s16, 1
      %s148 = scalar_select %p147, %s16, 1
      %p149 = scmp.lt.s32.totalorder %s146, 63
      %s150 = scalar_select %p149, %s146, 63
      %s151 = smul.addr %s148, 64
      %s152 = sadd.s32 %s150, %s151
      %s153 = smul.addr %s152, 8
      %s154 = scalar_lea.vmem %s1, %s153
      %s155 = smul.u32 64, %s17
      %v156 = vld [vmem:[%s144] sm:$0xff]
      %v157 = vld [vmem:[%s144 + $0x8] sm:$0xff]
      %v158 = vld [vmem:[%s144 + $0x10] sm:$0xff]
      %v159 = vld [vmem:[%s144 + $0x18] sm:$0xff]
      %v160 = vld [vmem:[%s144 + $0x20] sm:$0xff]
      %v161 = vld [vmem:[%s144 + $0x28] sm:$0xff]
      %v162 = vld [vmem:[%s144 + $0x30] sm:$0xff]
      %v163 = vld [vmem:[%s144 + $0x38] sm:$0xff]
      %v164 = vld [vmem:[%s144 + $0x40] sm:$0xff]
      %v165 = vld [vmem:[%s144 + $0x48] sm:$0xff]
      %v166 = vld [vmem:[%s144 + $0x50] sm:$0xff]
      %v167 = vld [vmem:[%s144 + $0x58] sm:$0xff]
      %v168 = vld [vmem:[%s144 + $0x60] sm:$0xff]
      %v169 = vld [vmem:[%s144 + $0x68] sm:$0xff]
      %v170 = vld [vmem:[%s144 + $0x70] sm:$0xff]
      %v171 = vld [vmem:[%s144 + $0x78] sm:$0xff]
      %v172 = vld [vmem:[%s144 + $0x80] sm:$0xff]
      %v173 = vld [vmem:[%s144 + $0x88] sm:$0xff]
      %v174 = vld [vmem:[%s144 + $0x90] sm:$0xff]
      %v175 = vld [vmem:[%s144 + $0x98] sm:$0xff]
      %v176 = vld [vmem:[%s144 + $0xa0] sm:$0xff]
      %v177 = vld [vmem:[%s144 + $0xa8] sm:$0xff]
      %v178 = vld [vmem:[%s144 + $0xb0] sm:$0xff]
      %v179 = vld [vmem:[%s144 + $0xb8] sm:$0xff]
      %v180 = vld [vmem:[%s144 + $0xc0] sm:$0xff]
      %v181 = vld [vmem:[%s144 + $0xc8] sm:$0xff]
      %v182 = vld [vmem:[%s144 + $0xd0] sm:$0xff]
      %v183 = vld [vmem:[%s144 + $0xd8] sm:$0xff]
      %v184 = vld [vmem:[%s144 + $0xe0] sm:$0xff]
      %v185 = vld [vmem:[%s144 + $0xe8] sm:$0xff]
      %v186 = vld [vmem:[%s144 + $0xf0] sm:$0xff]
      %v187 = vld [vmem:[%s144 + $0xf8] sm:$0xff]
      %v188 = vld [vmem:[%s144 + $0x100] sm:$0xff]
      %v189 = vld [vmem:[%s144 + $0x108] sm:$0xff]
      %v190 = vld [vmem:[%s144 + $0x110] sm:$0xff]
      %v191 = vld [vmem:[%s144 + $0x118] sm:$0xff]
      %v192 = vld [vmem:[%s144 + $0x120] sm:$0xff]
      %v193 = vld [vmem:[%s144 + $0x128] sm:$0xff]
      %v194 = vld [vmem:[%s144 + $0x130] sm:$0xff]
      %v195 = vld [vmem:[%s144 + $0x138] sm:$0xff]
      %v196 = vld [vmem:[%s144 + $0x140] sm:$0xff]
      %v197 = vld [vmem:[%s144 + $0x148] sm:$0xff]
      %v198 = vld [vmem:[%s144 + $0x150] sm:$0xff]
      %v199 = vld [vmem:[%s144 + $0x158] sm:$0xff]
      %v200 = vld [vmem:[%s144 + $0x160] sm:$0xff]
      %v201 = vld [vmem:[%s144 + $0x168] sm:$0xff]
      %v202 = vld [vmem:[%s144 + $0x170] sm:$0xff]
      %v203 = vld [vmem:[%s144 + $0x178] sm:$0xff]
      %v204 = vld [vmem:[%s144 + $0x180] sm:$0xff]
      %v205 = vld [vmem:[%s144 + $0x188] sm:$0xff]
      %v206 = vld [vmem:[%s144 + $0x190] sm:$0xff]
      %v207 = vld [vmem:[%s144 + $0x198] sm:$0xff]
      %v208 = vld [vmem:[%s144 + $0x1a0] sm:$0xff]
      %v209 = vld [vmem:[%s144 + $0x1a8] sm:$0xff]
      %v210 = vld [vmem:[%s144 + $0x1b0] sm:$0xff]
      %v211 = vld [vmem:[%s144 + $0x1b8] sm:$0xff]
      %v212 = vld [vmem:[%s144 + $0x1c0] sm:$0xff]
      %v213 = vld [vmem:[%s144 + $0x1c8] sm:$0xff]
      %v214 = vld [vmem:[%s144 + $0x1d0] sm:$0xff]
      %v215 = vld [vmem:[%s144 + $0x1d8] sm:$0xff]
      %v216 = vld [vmem:[%s144 + $0x1e0] sm:$0xff]
      %v217 = vld [vmem:[%s144 + $0x1e8] sm:$0xff]
      %v218 = vld [vmem:[%s144 + $0x1f0] sm:$0xff]
      %v219 = vld [vmem:[%s144 + $0x1f8] sm:$0xff]
      %220 = vxpose.xlu0.b32.start [1/16] %v156, 128
      %221 = vxpose.xlu0.b32.cont [2/16] %v157, 128
      %222 = vxpose.xlu0.b32.cont [3/16] %v158, 128
      %223 = vxpose.xlu0.b32.cont [4/16] %v159, 128
      %224 = vxpose.xlu0.b32.cont [5/16] %v160, 128
      %225 = vxpose.xlu0.b32.cont [6/16] %v161, 128
      %226 = vxpose.xlu0.b32.cont [7/16] %v162, 128
      %227 = vxpose.xlu0.b32.cont [8/16] %v163, 128
      %228 = vxpose.xlu0.b32.cont [9/16] %v164, 128
      %229 = vxpose.xlu0.b32.cont [10/16] %v165, 128
      %230 = vxpose.xlu0.b32.cont [11/16] %v166, 128
      %231 = vxpose.xlu0.b32.cont [12/16] %v167, 128
      %232 = vxpose.xlu0.b32.cont [13/16] %v168, 128
      %233 = vxpose.xlu0.b32.cont [14/16] %v169, 128
      %234 = vxpose.xlu0.b32.cont [15/16] %v170, 128
      %235 = vxpose.xlu0.b32.end [16/16] %v171, 128
      %v236 = vpop.trf.xlu0
      %v237 = vpop.trf.xlu0
      %v238 = vpop.trf.xlu0
      %v239 = vpop.trf.xlu0
      %v240 = vpop.trf.xlu0
      %v241 = vpop.trf.xlu0
      %v242 = vpop.trf.xlu0
      %v243 = vpop.trf.xlu0
      %v244 = vpop.trf.xlu0
      %v245 = vpop.trf.xlu0
      %v246 = vpop.trf.xlu0
      %v247 = vpop.trf.xlu0
      %v248 = vpop.trf.xlu0
      %v249 = vpop.trf.xlu0
      %v250 = vpop.trf.xlu0
      %v251 = vpop.trf.xlu0
      %252 = vxpose.xlu0.b32.start [1/16] %v172, 128
      %253 = vxpose.xlu0.b32.cont [2/16] %v173, 128
      %254 = vxpose.xlu0.b32.cont [3/16] %v174, 128
      %255 = vxpose.xlu0.b32.cont [4/16] %v175, 128
      %256 = vxpose.xlu0.b32.cont [5/16] %v176, 128
      %257 = vxpose.xlu0.b32.cont [6/16] %v177, 128
      %258 = vxpose.xlu0.b32.cont [7/16] %v178, 128
      %259 = vxpose.xlu0.b32.cont [8/16] %v179, 128
      %260 = vxpose.xlu0.b32.cont [9/16] %v180, 128
      %261 = vxpose.xlu0.b32.cont [10/16] %v181, 128
      %262 = vxpose.xlu0.b32.cont [11/16] %v182, 128
      %263 = vxpose.xlu0.b32.cont [12/16] %v183, 128
      %264 = vxpose.xlu0.b32.cont [13/16] %v184, 128
      %265 = vxpose.xlu0.b32.cont [14/16] %v185, 128
      %266 = vxpose.xlu0.b32.cont [15/16] %v186, 128
      %267 = vxpose.xlu0.b32.end [16/16] %v187, 128
      %v268 = vpop.trf.xlu0
      %v269 = vpop.trf.xlu0
      %v270 = vpop.trf.xlu0
      %v271 = vpop.trf.xlu0
      %v272 = vpop.trf.xlu0
      %v273 = vpop.trf.xlu0
      %v274 = vpop.trf.xlu0
      %v275 = vpop.trf.xlu0
      %v276 = vpop.trf.xlu0
      %v277 = vpop.trf.xlu0
      %v278 = vpop.trf.xlu0
      %v279 = vpop.trf.xlu0
      %v280 = vpop.trf.xlu0
      %v281 = vpop.trf.xlu0
      %v282 = vpop.trf.xlu0
      %v283 = vpop.trf.xlu0
      %284 = vxpose.xlu0.b32.start [1/16] %v188, 128
      %285 = vxpose.xlu0.b32.cont [2/16] %v189, 128
      %286 = vxpose.xlu0.b32.cont [3/16] %v190, 128
      %287 = vxpose.xlu0.b32.cont [4/16] %v191, 128
      %288 = vxpose.xlu0.b32.cont [5/16] %v192, 128
      %289 = vxpose.xlu0.b32.cont [6/16] %v193, 128
      %290 = vxpose.xlu0.b32.cont [7/16] %v194, 128
      %291 = vxpose.xlu0.b32.cont [8/16] %v195, 128
      %292 = vxpose.xlu0.b32.cont [9/16] %v196, 128
      %293 = vxpose.xlu0.b32.cont [10/16] %v197, 128
      %294 = vxpose.xlu0.b32.cont [11/16] %v198, 128
      %295 = vxpose.xlu0.b32.cont [12/16] %v199, 128
      %296 = vxpose.xlu0.b32.cont [13/16] %v200, 128
      %297 = vxpose.xlu0.b32.cont [14/16] %v201, 128
      %298 = vxpose.xlu0.b32.cont [15/16] %v202, 128
      %299 = vxpose.xlu0.b32.end [16/16] %v203, 128
      %v300 = vpop.trf.xlu0
      %v301 = vpop.trf.xlu0
      %v302 = vpop.trf.xlu0
      %v303 = vpop.trf.xlu0
      %v304 = vpop.trf.xlu0
      %v305 = vpop.trf.xlu0
      %v306 = vpop.trf.xlu0
      %v307 = vpop.trf.xlu0
      %v308 = vpop.trf.xlu0
      %v309 = vpop.trf.xlu0
      %v310 = vpop.trf.xlu0
      %v311 = vpop.trf.xlu0
      %v312 = vpop.trf.xlu0
      %v313 = vpop.trf.xlu0
      %v314 = vpop.trf.xlu0
      %v315 = vpop.trf.xlu0
      %316 = vxpose.xlu0.b32.start [1/16] %v204, 128
      %317 = vxpose.xlu0.b32.cont [2/16] %v205, 128
      %318 = vxpose.xlu0.b32.cont [3/16] %v206, 128
      %319 = vxpose.xlu0.b32.cont [4/16] %v207, 128
      %320 = vxpose.xlu0.b32.cont [5/16] %v208, 128
      %321 = vxpose.xlu0.b32.cont [6/16] %v209, 128
      %322 = vxpose.xlu0.b32.cont [7/16] %v210, 128
      %323 = vxpose.xlu0.b32.cont [8/16] %v211, 128
      %324 = vxpose.xlu0.b32.cont [9/16] %v212, 128
      %325 = vxpose.xlu0.b32.cont [10/16] %v213, 128
      %326 = vxpose.xlu0.b32.cont [11/16] %v214, 128
      %327 = vxpose.xlu0.b32.cont [12/16] %v215, 128
      %328 = vxpose.xlu0.b32.cont [13/16] %v216, 128
      %329 = vxpose.xlu0.b32.cont [14/16] %v217, 128
      %330 = vxpose.xlu0.b32.cont [15/16] %v218, 128
      %331 = vxpose.xlu0.b32.end [16/16] %v219, 128
      %v332 = vpop.trf.xlu0
      %v333 = vpop.trf.xlu0
      %v334 = vpop.trf.xlu0
      %v335 = vpop.trf.xlu0
      %v336 = vpop.trf.xlu0
      %v337 = vpop.trf.xlu0
      %v338 = vpop.trf.xlu0
      %v339 = vpop.trf.xlu0
      %v340 = vpop.trf.xlu0
      %v341 = vpop.trf.xlu0
      %v342 = vpop.trf.xlu0
      %v343 = vpop.trf.xlu0
      %v344 = vpop.trf.xlu0
      %v345 = vpop.trf.xlu0
      %v346 = vpop.trf.xlu0
      %v347 = vpop.trf.xlu0
      %v348 = vmul.f32 %v236, 0.5
      %v349 = vmul.f32 %v268, 0.5
      %v350 = vmul.f32 %v300, 0.5
      %v351 = vmul.f32 %v332, 0.5
      %vm352 = vcmask 1047557
      %v353 = vsel %vm352, %v236, -inf
      %vm354 = vcmask 1044480
      %v355 = vsel %vm354, %v237, -inf
      %v356 = vmax.f32 %v353, %v355
      %v357 = vrot.slane %v356, 4
      %v358 = vmax.f32 %v356, %v357
      %v359 = vrot.slane %v358, 2
      %v360 = vmax.f32 %v358, %v359
      %v361 = vrot.slane %v360, 1
      %v362 = vmax.f32 %v360, %v361
      %v363 = vsel %vm352, %v268, -inf
      %v364 = vsel %vm354, %v269, -inf
      %v365 = vmax.f32 %v363, %v364
      %v366 = vrot.slane %v365, 4
      %v367 = vmax.f32 %v365, %v366
      %v368 = vrot.slane %v367, 2
      %v369 = vmax.f32 %v367, %v368
      %v370 = vrot.slane %v369, 1
      %v371 = vmax.f32 %v369, %v370
      %v372 = vsel %vm352, %v300, -inf
      %v373 = vsel %vm354, %v301, -inf
      %v374 = vmax.f32 %v372, %v373
      %v375 = vrot.slane %v374, 4
      %v376 = vmax.f32 %v374, %v375
      %v377 = vrot.slane %v376, 2
      %v378 = vmax.f32 %v376, %v377
      %v379 = vrot.slane %v378, 1
      %v380 = vmax.f32 %v378, %v379
      %v381 = vsel %vm352, %v332, -inf
      %v382 = vsel %vm354, %v333, -inf
      %v383 = vmax.f32 %v381, %v382
      %v384 = vrot.slane %v383, 4
      %v385 = vmax.f32 %v383, %v384
      %v386 = vrot.slane %v385, 2
      %v387 = vmax.f32 %v385, %v386
      %v388 = vrot.slane %v387, 1
      %v389 = vmax.f32 %v387, %v388
      %v390 = vlaneseq
      %v391 = vshrl.u32 %v390, 7
      %vm392 = vcmp.eq.f32.partialorder %v236, %v362
      %vm393 = vcmp.eq.f32.partialorder %v268, %v371
      %vm394 = vcmp.eq.f32.partialorder %v300, %v380
      %vm395 = vcmp.eq.f32.partialorder %v332, %v389
      %vm396 = vcmp.eq.f32.partialorder %v237, %v362
      %vm397 = vcmp.eq.f32.partialorder %v269, %v371
      %vm398 = vcmp.eq.f32.partialorder %v301, %v380
      %vm399 = vcmp.eq.f32.partialorder %v333, %v389
      %v400 = vrot.slane %v391, 3
      %v401 = vsel %vm392, %v400, 8
      %v402 = vsel %vm393, %v400, 8
      %v403 = vsel %vm394, %v400, 8
      %v404 = vsel %vm395, %v400, 8
      %v405 = vsel %vm396, %v400, 8
      %v406 = vsel %vm397, %v400, 8
      %v407 = vsel %vm398, %v400, 8
      %v408 = vsel %vm399, %v400, 8
      %v409 = vsel %vm352, %v401, 2147483647
      %v410 = vsel %vm354, %v405, 2147483647
      %vm411 = vcmp.lt.s32.totalorder %v409, %v410
      %v412 = vsel %vm411, %v409, %v410
      %v413 = vrot.slane %v412, 4
      %vm414 = vcmp.lt.s32.totalorder %v412, %v413
      %v415 = vsel %vm414, %v412, %v413
      %v416 = vrot.slane %v415, 2
      %vm417 = vcmp.lt.s32.totalorder %v415, %v416
      %v418 = vsel %vm417, %v415, %v416
      %v419 = vrot.slane %v418, 1
      %vm420 = vcmp.lt.s32.totalorder %v418, %v419
      %v421 = vsel %vm420, %v418, %v419
      %v422 = vsel %vm352, %v402, 2147483647
      %v423 = vsel %vm354, %v406, 2147483647
      %vm424 = vcmp.lt.s32.totalorder %v422, %v423
      %v425 = vsel %vm424, %v422, %v423
      %v426 = vrot.slane %v425, 4
      %vm427 = vcmp.lt.s32.totalorder %v425, %v426
      %v428 = vsel %vm427, %v425, %v426
      %v429 = vrot.slane %v428, 2
      %vm430 = vcmp.lt.s32.totalorder %v428, %v429
      %v431 = vsel %vm430, %v428, %v429
      %v432 = vrot.slane %v431, 1
      %vm433 = vcmp.lt.s32.totalorder %v431, %v432
      %v434 = vsel %vm433, %v431, %v432
      %v435 = vsel %vm352, %v403, 2147483647
      %v436 = vsel %vm354, %v407, 2147483647
      %vm437 = vcmp.lt.s32.totalorder %v435, %v436
      %v438 = vsel %vm437, %v435, %v436
      %v439 = vrot.slane %v438, 4
      %vm440 = vcmp.lt.s32.totalorder %v438, %v439
      %v441 = vsel %vm440, %v438, %v439
      %v442 = vrot.slane %v441, 2
      %vm443 = vcmp.lt.s32.totalorder %v441, %v442
      %v444 = vsel %vm443, %v441, %v442
      %v445 = vrot.slane %v444, 1
      %vm446 = vcmp.lt.s32.totalorder %v444, %v445
      %v447 = vsel %vm446, %v444, %v445
      %v448 = vsel %vm352, %v404, 2147483647
      %v449 = vsel %vm354, %v408, 2147483647
      %vm450 = vcmp.lt.s32.totalorder %v448, %v449
      %v451 = vsel %vm450, %v448, %v449
      %v452 = vrot.slane %v451, 4
      %vm453 = vcmp.lt.s32.totalorder %v451, %v452
      %v454 = vsel %vm453, %v451, %v452
      %v455 = vrot.slane %v454, 2
      %vm456 = vcmp.lt.s32.totalorder %v454, %v455
      %v457 = vsel %vm456, %v454, %v455
      %v458 = vrot.slane %v457, 1
      %vm459 = vcmp.lt.s32.totalorder %v457, %v458
      %v460 = vsel %vm459, %v457, %v458
      %vm461 = vcmp.eq.s32.totalorder %v391, 0
      %v466 = vrot.slane %v348, 2
      %v467 = vrot.slane %v349, 2
      %v468 = vrot.slane %v350, 2
      %v469 = vrot.slane %v351, 2
      %v474 = vsub.f32 %v236, %v466
      %v475 = vsub.f32 %v268, %v467
      %v476 = vsub.f32 %v300, %v468
      %v477 = vsub.f32 %v332, %v469
      %vm478 = vcmp.eq.s32.totalorder %v391, 1
      %vm479 = vcmp.eq.s32.totalorder %v391, 2
      %v480 = vadd.f32 %v236, %v466
      %v481 = vadd.f32 %v268, %v467
      %v482 = vadd.f32 %v300, %v468
      %v483 = vadd.f32 %v332, %v469
      %vm484 = vcmp.eq.s32.totalorder %v391, 3
      %vm485 = vcmp.eq.s32.totalorder %v391, 4
      %v486 = vmul.f32 %v362, %v236
      %v487 = vmul.f32 %v371, %v268
      %v488 = vmul.f32 %v380, %v300
      %v489 = vmul.f32 %v389, %v332
      %v490 = vcvt.s32.f32 %v421
      %v491 = vcvt.s32.f32 %v434
      %v492 = vcvt.s32.f32 %v447
      %v493 = vcvt.s32.f32 %v460
      %v494 = vlaneseq
      %v495 = vshrl.u32 %v494, 7
      %v496 = vsub.s32 4, %v495
      %v497 = vrot.slane %v486, %v496
      %v498 = vlaneseq
      %v499 = vshrl.u32 %v498, 7
      %v500 = vsub.s32 4, %v499
      %v501 = vrot.slane %v487, %v500
      %v502 = vlaneseq
      %v503 = vshrl.u32 %v502, 7
      %v504 = vsub.s32 4, %v503
      %v505 = vrot.slane %v488, %v504
      %v506 = vlaneseq
      %v507 = vshrl.u32 %v506, 7
      %v508 = vsub.s32 4, %v507
      %v509 = vrot.slane %v489, %v508
      %v510 = vsel %vm485, %v497, %v490
      %v511 = vsel %vm485, %v501, %v491
      %v512 = vsel %vm485, %v505, %v492
      %v513 = vsel %vm485, %v509, %v493
      %v514 = vlaneseq
      %v515 = vshrl.u32 %v514, 7
      %v516 = vsub.s32 1, %v515
      %v517 = vrot.slane %v480, %v516
      %v518 = vlaneseq
      %v519 = vshrl.u32 %v518, 7
      %v520 = vsub.s32 1, %v519
      %v521 = vrot.slane %v481, %v520
      %v522 = vlaneseq
      %v523 = vshrl.u32 %v522, 7
      %v524 = vsub.s32 1, %v523
      %v525 = vrot.slane %v482, %v524
      %v526 = vlaneseq
      %v527 = vshrl.u32 %v526, 7
      %v528 = vsub.s32 1, %v527
      %v529 = vrot.slane %v483, %v528
      %v530 = vsel %vm484, %v517, %v510
      %v531 = vsel %vm484, %v521, %v511
      %v532 = vsel %vm484, %v525, %v512
      %v533 = vsel %vm484, %v529, %v513
      %v534 = vlaneseq
      %v535 = vshrl.u32 %v534, 7
      %v536 = vsub.s32 0, %v535
      %v537 = vrot.slane %v480, %v536
      %v538 = vlaneseq
      %v539 = vshrl.u32 %v538, 7
      %v540 = vsub.s32 0, %v539
      %v541 = vrot.slane %v481, %v540
      %v542 = vlaneseq
      %v543 = vshrl.u32 %v542, 7
      %v544 = vsub.s32 0, %v543
      %v545 = vrot.slane %v482, %v544
      %v546 = vlaneseq
      %v547 = vshrl.u32 %v546, 7
      %v548 = vsub.s32 0, %v547
      %v549 = vrot.slane %v483, %v548
      %v550 = vsel %vm479, %v537, %v530
      %v551 = vsel %vm479, %v541, %v531
      %v552 = vsel %vm479, %v545, %v532
      %v553 = vsel %vm479, %v549, %v533
      %v554 = vlaneseq
      %v555 = vshrl.u32 %v554, 7
      %v556 = vsub.s32 1, %v555
      %v557 = vrot.slane %v474, %v556
      %v558 = vlaneseq
      %v559 = vshrl.u32 %v558, 7
      %v560 = vsub.s32 1, %v559
      %v561 = vrot.slane %v475, %v560
      %v562 = vlaneseq
      %v563 = vshrl.u32 %v562, 7
      %v564 = vsub.s32 1, %v563
      %v565 = vrot.slane %v476, %v564
      %v566 = vlaneseq
      %v567 = vshrl.u32 %v566, 7
      %v568 = vsub.s32 1, %v567
      %v569 = vrot.slane %v477, %v568
      %v570 = vsel %vm478, %v557, %v550
      %v571 = vsel %vm478, %v561, %v551
      %v572 = vsel %vm478, %v565, %v552
      %v573 = vsel %vm478, %v569, %v553
      %v574 = vlaneseq
      %v575 = vshrl.u32 %v574, 7
      %v576 = vsub.s32 0, %v575
      %v577 = vrot.slane %v474, %v576
      %v578 = vlaneseq
      %v579 = vshrl.u32 %v578, 7
      %v580 = vsub.s32 0, %v579
      %v581 = vrot.slane %v475, %v580
      %v582 = vlaneseq
      %v583 = vshrl.u32 %v582, 7
      %v584 = vsub.s32 0, %v583
      %v585 = vrot.slane %v476, %v584
      %v586 = vlaneseq
      %v587 = vshrl.u32 %v586, 7
      %v588 = vsub.s32 0, %v587
      %v589 = vrot.slane %v477, %v588
      %v590 = vsel %vm461, %v577, %v570
      %v591 = vsel %vm461, %v581, %v571
      %v592 = vsel %vm461, %v585, %v572
      %v593 = vsel %vm461, %v589, %v573
      %594 = vxpose.xlu0.b32.start [1/16] %v590, 128
      %595 = vxpose.xlu0.b32.cont [2/16] 0.0, 128
      %596 = vxpose.xlu0.b32.cont [3/16] 0.0, 128
      %597 = vxpose.xlu0.b32.cont [4/16] 0.0, 128
      %598 = vxpose.xlu0.b32.cont [5/16] 0.0, 128
      %599 = vxpose.xlu0.b32.cont [6/16] 0.0, 128
      %600 = vxpose.xlu0.b32.cont [7/16] 0.0, 128
      %601 = vxpose.xlu0.b32.cont [8/16] 0.0, 128
      %602 = vxpose.xlu0.b32.cont [9/16] 0.0, 128
      %603 = vxpose.xlu0.b32.cont [10/16] 0.0, 128
      %604 = vxpose.xlu0.b32.cont [11/16] 0.0, 128
      %605 = vxpose.xlu0.b32.cont [12/16] 0.0, 128
      %606 = vxpose.xlu0.b32.cont [13/16] 0.0, 128
      %607 = vxpose.xlu0.b32.cont [14/16] 0.0, 128
      %608 = vxpose.xlu0.b32.cont [15/16] 0.0, 128
      %609 = vxpose.xlu0.b32.end [16/16] 0.0, 128
      %v610 = vpop.trf.xlu0
      %v611 = vpop.trf.xlu0
      %v612 = vpop.trf.xlu0
      %v613 = vpop.trf.xlu0
      %v614 = vpop.trf.xlu0
      %v615 = vpop.trf.xlu0
      %v616 = vpop.trf.xlu0
      %v617 = vpop.trf.xlu0
      %v618 = vpop.trf.xlu0
      %v619 = vpop.trf.xlu0
      %v620 = vpop.trf.xlu0
      %v621 = vpop.trf.xlu0
      %v622 = vpop.trf.xlu0
      %v623 = vpop.trf.xlu0
      %v624 = vpop.trf.xlu0
      %v625 = vpop.trf.xlu0
      %626 = vxpose.xlu0.b32.start [1/16] %v591, 128
      %627 = vxpose.xlu0.b32.cont [2/16] 0.0, 128
      %628 = vxpose.xlu0.b32.cont [3/16] 0.0, 128
      %629 = vxpose.xlu0.b32.cont [4/16] 0.0, 128
      %630 = vxpose.xlu0.b32.cont [5/16] 0.0, 128
      %631 = vxpose.xlu0.b32.cont [6/16] 0.0, 128
      %632 = vxpose.xlu0.b32.cont [7/16] 0.0, 128
      %633 = vxpose.xlu0.b32.cont [8/16] 0.0, 128
      %634 = vxpose.xlu0.b32.cont [9/16] 0.0, 128
      %635 = vxpose.xlu0.b32.cont [10/16] 0.0, 128
      %636 = vxpose.xlu0.b32.cont [11/16] 0.0, 128
      %637 = vxpose.xlu0.b32.cont [12/16] 0.0, 128
      %638 = vxpose.xlu0.b32.cont [13/16] 0.0, 128
      %639 = vxpose.xlu0.b32.cont [14/16] 0.0, 128
      %640 = vxpose.xlu0.b32.cont [15/16] 0.0, 128
      %641 = vxpose.xlu0.b32.end [16/16] 0.0, 128
      %v642 = vpop.trf.xlu0
      %v643 = vpop.trf.xlu0
      %v644 = vpop.trf.xlu0
      %v645 = vpop.trf.xlu0
      %v646 = vpop.trf.xlu0
      %v647 = vpop.trf.xlu0
      %v648 = vpop.trf.xlu0
      %v649 = vpop.trf.xlu0
      %v650 = vpop.trf.xlu0
      %v651 = vpop.trf.xlu0
      %v652 = vpop.trf.xlu0
      %v653 = vpop.trf.xlu0
      %v654 = vpop.trf.xlu0
      %v655 = vpop.trf.xlu0
      %v656 = vpop.trf.xlu0
      %v657 = vpop.trf.xlu0
      %658 = vxpose.xlu0.b32.start [1/16] %v592, 128
      %659 = vxpose.xlu0.b32.cont [2/16] 0.0, 128
      %660 = vxpose.xlu0.b32.cont [3/16] 0.0, 128
      %661 = vxpose.xlu0.b32.cont [4/16] 0.0, 128
      %662 = vxpose.xlu0.b32.cont [5/16] 0.0, 128
      %663 = vxpose.xlu0.b32.cont [6/16] 0.0, 128
      %664 = vxpose.xlu0.b32.cont [7/16] 0.0, 128
      %665 = vxpose.xlu0.b32.cont [8/16] 0.0, 128
      %666 = vxpose.xlu0.b32.cont [9/16] 0.0, 128
      %667 = vxpose.xlu0.b32.cont [10/16] 0.0, 128
      %668 = vxpose.xlu0.b32.cont [11/16] 0.0, 128
      %669 = vxpose.xlu0.b32.cont [12/16] 0.0, 128
      %670 = vxpose.xlu0.b32.cont [13/16] 0.0, 128
      %671 = vxpose.xlu0.b32.cont [14/16] 0.0, 128
      %672 = vxpose.xlu0.b32.cont [15/16] 0.0, 128
      %673 = vxpose.xlu0.b32.end [16/16] 0.0, 128
      %v674 = vpop.trf.xlu0
      %v675 = vpop.trf.xlu0
      %v676 = vpop.trf.xlu0
      %v677 = vpop.trf.xlu0
      %v678 = vpop.trf.xlu0
      %v679 = vpop.trf.xlu0
      %v680 = vpop.trf.xlu0
      %v681 = vpop.trf.xlu0
      %v682 = vpop.trf.xlu0
      %v683 = vpop.trf.xlu0
      %v684 = vpop.trf.xlu0
      %v685 = vpop.trf.xlu0
      %v686 = vpop.trf.xlu0
      %v687 = vpop.trf.xlu0
      %v688 = vpop.trf.xlu0
      %v689 = vpop.trf.xlu0
      %690 = vxpose.xlu0.b32.start [1/16] %v593, 128
      %691 = vxpose.xlu0.b32.cont [2/16] 0.0, 128
      %692 = vxpose.xlu0.b32.cont [3/16] 0.0, 128
      %693 = vxpose.xlu0.b32.cont [4/16] 0.0, 128
      %694 = vxpose.xlu0.b32.cont [5/16] 0.0, 128
      %695 = vxpose.xlu0.b32.cont [6/16] 0.0, 128
      %696 = vxpose.xlu0.b32.cont [7/16] 0.0, 128
      %697 = vxpose.xlu0.b32.cont [8/16] 0.0, 128
      %698 = vxpose.xlu0.b32.cont [9/16] 0.0, 128
      %699 = vxpose.xlu0.b32.cont [10/16] 0.0, 128
      %700 = vxpose.xlu0.b32.cont [11/16] 0.0, 128
      %701 = vxpose.xlu0.b32.cont [12/16] 0.0, 128
      %702 = vxpose.xlu0.b32.cont [13/16] 0.0, 128
      %703 = vxpose.xlu0.b32.cont [14/16] 0.0, 128
      %704 = vxpose.xlu0.b32.cont [15/16] 0.0, 128
      %705 = vxpose.xlu0.b32.end [16/16] 0.0, 128
      %v706 = vpop.trf.xlu0
      %v707 = vpop.trf.xlu0
      %v708 = vpop.trf.xlu0
      %v709 = vpop.trf.xlu0
      %v710 = vpop.trf.xlu0
      %v711 = vpop.trf.xlu0
      %v712 = vpop.trf.xlu0
      %v713 = vpop.trf.xlu0
      %v714 = vpop.trf.xlu0
      %v715 = vpop.trf.xlu0
      %v716 = vpop.trf.xlu0
      %v717 = vpop.trf.xlu0
      %v718 = vpop.trf.xlu0
      %v719 = vpop.trf.xlu0
      %v720 = vpop.trf.xlu0
      %v721 = vpop.trf.xlu0
      %vm722 = vcmask 48128
      %723 = vst.msk [vmem:[%s154] sm:$0xff] %vm722, %v610
      %724 = vst.msk [vmem:[%s154 + $0x8] sm:$0xff] %vm722, %v611
      %725 = vst.msk [vmem:[%s154 + $0x10] sm:$0xff] %vm722, %v612
      %726 = vst.msk [vmem:[%s154 + $0x18] sm:$0xff] %vm722, %v613
      %727 = vst.msk [vmem:[%s154 + $0x20] sm:$0xff] %vm722, %v614
      %728 = vst.msk [vmem:[%s154 + $0x28] sm:$0xff] %vm722, %v615
      %729 = vst.msk [vmem:[%s154 + $0x30] sm:$0xff] %vm722, %v616
      %730 = vst.msk [vmem:[%s154 + $0x38] sm:$0xff] %vm722, %v617
      %731 = vst.msk [vmem:[%s154 + $0x40] sm:$0xff] %vm722, %v618
      %732 = vst.msk [vmem:[%s154 + $0x48] sm:$0xff] %vm722, %v619
      %733 = vst.msk [vmem:[%s154 + $0x50] sm:$0xff] %vm722, %v620
      %734 = vst.msk [vmem:[%s154 + $0x58] sm:$0xff] %vm722, %v621
      %735 = vst.msk [vmem:[%s154 + $0x60] sm:$0xff] %vm722, %v622
      %736 = vst.msk [vmem:[%s154 + $0x68] sm:$0xff] %vm722, %v623
      %737 = vst.msk [vmem:[%s154 + $0x70] sm:$0xff] %vm722, %v624
      %738 = vst.msk [vmem:[%s154 + $0x78] sm:$0xff] %vm722, %v625
      %739 = vst.msk [vmem:[%s154 + $0x80] sm:$0xff] %vm722, %v642
      %740 = vst.msk [vmem:[%s154 + $0x88] sm:$0xff] %vm722, %v643
      %741 = vst.msk [vmem:[%s154 + $0x90] sm:$0xff] %vm722, %v644
      %742 = vst.msk [vmem:[%s154 + $0x98] sm:$0xff] %vm722, %v645
      %743 = vst.msk [vmem:[%s154 + $0xa0] sm:$0xff] %vm722, %v646
      %744 = vst.msk [vmem:[%s154 + $0xa8] sm:$0xff] %vm722, %v647
      %745 = vst.msk [vmem:[%s154 + $0xb0] sm:$0xff] %vm722, %v648
      %746 = vst.msk [vmem:[%s154 + $0xb8] sm:$0xff] %vm722, %v649
      %747 = vst.msk [vmem:[%s154 + $0xc0] sm:$0xff] %vm722, %v650
      %748 = vst.msk [vmem:[%s154 + $0xc8] sm:$0xff] %vm722, %v651
      %749 = vst.msk [vmem:[%s154 + $0xd0] sm:$0xff] %vm722, %v652
      %750 = vst.msk [vmem:[%s154 + $0xd8] sm:$0xff] %vm722, %v653
      %751 = vst.msk [vmem:[%s154 + $0xe0] sm:$0xff] %vm722, %v654
      %752 = vst.msk [vmem:[%s154 + $0xe8] sm:$0xff] %vm722, %v655
      %753 = vst.msk [vmem:[%s154 + $0xf0] sm:$0xff] %vm722, %v656
      %754 = vst.msk [vmem:[%s154 + $0xf8] sm:$0xff] %vm722, %v657
      %755 = vst.msk [vmem:[%s154 + $0x100] sm:$0xff] %vm722, %v674
      %756 = vst.msk [vmem:[%s154 + $0x108] sm:$0xff] %vm722, %v675
      %757 = vst.msk [vmem:[%s154 + $0x110] sm:$0xff] %vm722, %v676
      %758 = vst.msk [vmem:[%s154 + $0x118] sm:$0xff] %vm722, %v677
      %759 = vst.msk [vmem:[%s154 + $0x120] sm:$0xff] %vm722, %v678
      %760 = vst.msk [vmem:[%s154 + $0x128] sm:$0xff] %vm722, %v679
      %761 = vst.msk [vmem:[%s154 + $0x130] sm:$0xff] %vm722, %v680
      %762 = vst.msk [vmem:[%s154 + $0x138] sm:$0xff] %vm722, %v681
      %763 = vst.msk [vmem:[%s154 + $0x140] sm:$0xff] %vm722, %v682
      %764 = vst.msk [vmem:[%s154 + $0x148] sm:$0xff] %vm722, %v683
      %765 = vst.msk [vmem:[%s154 + $0x150] sm:$0xff] %vm722, %v684
      %766 = vst.msk [vmem:[%s154 + $0x158] sm:$0xff] %vm722, %v685
      %767 = vst.msk [vmem:[%s154 + $0x160] sm:$0xff] %vm722, %v686
      %768 = vst.msk [vmem:[%s154 + $0x168] sm:$0xff] %vm722, %v687
      %769 = vst.msk [vmem:[%s154 + $0x170] sm:$0xff] %vm722, %v688
      %770 = vst.msk [vmem:[%s154 + $0x178] sm:$0xff] %vm722, %v689
      %771 = vst.msk [vmem:[%s154 + $0x180] sm:$0xff] %vm722, %v706
      %772 = vst.msk [vmem:[%s154 + $0x188] sm:$0xff] %vm722, %v707
      %773 = vst.msk [vmem:[%s154 + $0x190] sm:$0xff] %vm722, %v708
      %774 = vst.msk [vmem:[%s154 + $0x198] sm:$0xff] %vm722, %v709
      %775 = vst.msk [vmem:[%s154 + $0x1a0] sm:$0xff] %vm722, %v710
      %776 = vst.msk [vmem:[%s154 + $0x1a8] sm:$0xff] %vm722, %v711
      %777 = vst.msk [vmem:[%s154 + $0x1b0] sm:$0xff] %vm722, %v712
      %778 = vst.msk [vmem:[%s154 + $0x1b8] sm:$0xff] %vm722, %v713
      %779 = vst.msk [vmem:[%s154 + $0x1c0] sm:$0xff] %vm722, %v714
      %780 = vst.msk [vmem:[%s154 + $0x1c8] sm:$0xff] %vm722, %v715
      %781 = vst.msk [vmem:[%s154 + $0x1d0] sm:$0xff] %vm722, %v716
      %782 = vst.msk [vmem:[%s154 + $0x1d8] sm:$0xff] %vm722, %v717
      %783 = vst.msk [vmem:[%s154 + $0x1e0] sm:$0xff] %vm722, %v718
      %784 = vst.msk [vmem:[%s154 + $0x1e8] sm:$0xff] %vm722, %v719
      %785 = vst.msk [vmem:[%s154 + $0x1f0] sm:$0xff] %vm722, %v720
      %786 = vst.msk [vmem:[%s154 + $0x1f8] sm:$0xff] %vm722, %v721
      %s787 = smul.u32 64, %s17
      %p788 = scmp.lt.s32.totalorder %s16, 1
      %s789 = scalar_select %p788, %s16, 1
      %p790 = scmp.lt.s32.totalorder %s787, 63
      %s791 = scalar_select %p790, %s787, 63
      %s792 = smul.addr %s789, 64
      %s793 = sadd.s32 %s791, %s792
      %s794 = smul.addr %s793, 8
      %s795 = scalar_lea.vmem %s1, %s794
      // Predicated region
      $region25: #{tpu_custom_call.1} parent=23 // pred_check
        %p796 = pneg %p72
      $region26: #{tpu_custom_call.1} parent=23 // pred_check_branch
        %798 = sbr.rel (%p796) target = $region28
      $region27: #{tpu_custom_call.1} parent=23 // pred_region
        %s799 = smul.u32 64, %s17
      $region28: #{tpu_custom_call.1} parent=23 // pred_fallthru
        _
    $region24: #{tpu_custom_call.1} parent=5 // pred_fallthru
      _
    %p800 = scmp.le.s32.totalorder 2, %s7
    // Predicated region
    $region29: #{tpu_custom_call.1} parent=5 // pred_check
      %p801 = pneg %p800
    $region30: #{tpu_custom_call.1} parent=5 // pred_check_branch
      %803 = sbr.rel (%p801) target = $region32
    $region31: #{tpu_custom_call.1} parent=5 // pred_region
      %s804 = ssub.s32 %s7, 2
      // Predicated region
      $region33: #{tpu_custom_call.1} parent=31 // pred_check
        %p805 = pneg %p78
      $region34: #{tpu_custom_call.1} parent=31 // pred_check_branch
        %807 = sbr.rel (%p805) target = $region36
      $region35: #{tpu_custom_call.1} parent=31 // pred_region
        %s808 = smul.u32 64, %s19
        %p809 = scmp.lt.s32.totalorder %s18, 1
        %s810 = scalar_select %p809, %s18, 1
        %p811 = scmp.lt.s32.totalorder %s808, 63
        %s812 = scalar_select %p811, %s808, 63
        %s813 = smul.addr %s810, 64
        %s814 = sadd.s32 %s812, %s813
        %s815 = smul.addr %s814, 8
        %s816 = scalar_lea.vmem %s1, %s815
      $region36: #{tpu_custom_call.1} parent=31 // pred_fallthru
        _
    $region32: #{tpu_custom_call.1} parent=5 // pred_fallthru
      _
  $region6: #{tpu_custom_call.1} parent=0 // loop_footer
    %s11 = sadd.s32 1, %s7
  $region7: #{tpu_custom_call.1} parent=0 // loop_footer_branch
    %6 = sbr.rel target = $region3
  $region8: #{tpu_custom_call.1} parent=0 // loop_exit
    _

</llo_original>
